<compile_context>
chip_gen: v7x
topology: tpu7x:2x2x1
jax: 0.10.0
libtpu: 0.0.40
codegen_flags: <defaults>
</compile_context>

<pallas_src>
import functools

import jax
import jax.numpy as jnp
import numpy as np
from jax import lax
from jax.experimental import pallas as pl
from jax.experimental.pallas import tpu as pltpu


def _thp_kernel(x_ref, mask_ref, v_ref, o_ref, *, eps_sq, q_tile):
    # x_ref:    (Lp, D)  bf16 — one batch element (q and k), resident across q tiles
    # mask_ref: (Lq, Lp) bf16 mask rows for this query tile (the only big stream)
    # v_ref:    (Lp, D)  bf16 ELU(linear(x)), precomputed in the wrapper, resident
    # o_ref:    (Lq, D)  f32 output rows for this query tile
    qi = pl.program_id(1)

    if q_tile == x_ref.shape[0]:
        q = x_ref[...]
    else:
        row0 = pl.multiple_of(qi * q_tile, q_tile)
        q = x_ref[pl.ds(row0, q_tile), :]

    # q @ k^T without materializing a transpose: contract the last dims.
    # bf16 operands, f32 accumulation on the MXU.
    qk = lax.dot_general(q, x_ref[...],
                         dimension_numbers=(((1,), (1,)), ((), ())),
                         preferred_element_type=jnp.float32)
    qk = qk * mask_ref[...].astype(jnp.float32)        # mask applied in f32

    # Row-wise L2 normalization with the 1/sqrt(D) temperature folded into eps:
    #   normalize((q/T)@k^T * m, eps) == (q@k^T * m) * rsqrt(max(||.||^2, (eps*T)^2))
    ss = jnp.sum(qk * qk, axis=-1, keepdims=True)
    attn = qk * lax.rsqrt(jnp.maximum(ss, eps_sq))     # single EUP rsqrt

    # out = attn @ v (bf16 operands, f32 accumulation).
    o_ref[...] = jnp.dot(attn.astype(jnp.bfloat16), v_ref[...],
                         preferred_element_type=jnp.float32).astype(o_ref.dtype)


def _vmem_capacity_bytes():
    """Physical VMEM per TensorCore; falls back to 128 MiB if unknown."""
    try:
        return int(pltpu.get_tpu_info().vmem_capacity_bytes)
    except Exception:
        return 128 * 1024 * 1024


def _vmem_estimate(L, D, t):
    """Rough per-step VMEM footprint (bytes) for query tile t."""
    resident = 2 * 2 * (L * D * 2)          # bf16 x and v, double-buffered
    mask = 2 * (t * L * 2)                  # bf16 mask slab, double-buffered
    out = 2 * (t * D * 4)                   # f32 output slab, double-buffered
    live = int(2.5 * (t * L * 4))           # f32 qk/attn + bf16 attn intermediates
    return resident + mask + out + live


def _choose_q_tile(L, D, vmem_cap):
    """Generation-aware query-row tile: <=256 on 64-MiB parts (v7x), up to 1024
    on 128-MiB parts (v5e/v6e).  Always a multiple of 8, or the full L."""
    small_vmem = vmem_cap < (96 << 20)
    cap = 256 if small_vmem else 1024
    budget = vmem_cap // 2                  # leave headroom for compiler scratch

    if L <= cap and _vmem_estimate(L, D, L) <= budget:
        return L                            # single tile (valid for any L)

    candidates = [t for t in (1024, 512, 256, 128, 64, 32, 16, 8) if t <= cap]
    for t in candidates:                    # prefer a tile that divides L (no padding)
        if L % t == 0 and _vmem_estimate(L, D, t) <= budget:
            return t
    for t in candidates:                    # otherwise largest that fits; rows get padded
        if _vmem_estimate(L, D, t) <= budget:
            return t
    return 8


def thp_layer(output, slf_attn_mask, weight, bias, *, q_tile=None):
    """output: (B, L, D), slf_attn_mask: (B, L, L), weight: (D, D), bias: (D,)."""
    B, L, D = output.shape
    temperature = float(D) ** 0.5
    eps_sq = float((1e-5 * temperature) ** 2)   # temperature folded into the eps clamp

    # v = ELU(x @ W^T + b): one big, well-shaped f32 XLA matmul, cast once to bf16.
    x32 = output.astype(jnp.float32)
    lin = jnp.einsum("bld,ed->ble", x32, jnp.asarray(weight, jnp.float32)) \
        + jnp.asarray(bias, jnp.float32)
    v = jnp.where(lin > 0, lin, jnp.expm1(lin)).astype(jnp.bfloat16)

    # bf16 q/k and bf16 mask: halves the dominant HBM streams and resident VMEM.
    x_bf = output.astype(jnp.bfloat16)
    mask_bf = slf_attn_mask.astype(jnp.bfloat16)

    vmem_cap = _vmem_capacity_bytes()
    if q_tile is None:
        q_tile = _choose_q_tile(L, D, vmem_cap)
    assert q_tile % 8 == 0 or q_tile >= L, "q_tile must be a multiple of 8 (or >= L)"

    # Pad the query-row axis so q_tile always divides it.  Padded x rows are zero
    # -> padded qk columns are exactly zero (then masked by the zero-padded mask),
    # and padded output rows are sliced off below.  Replaces the old q_tile = L
    # fallback that could blow up VMEM for large, non-divisible L.
    L_pad = int(pl.cdiv(L, q_tile)) * q_tile
    if L_pad != L:
        pad = L_pad - L
        x_bf = jnp.pad(x_bf, ((0, 0), (0, pad), (0, 0)))
        v = jnp.pad(v, ((0, 0), (0, pad), (0, 0)))
        mask_bf = jnp.pad(mask_bf, ((0, 0), (0, pad), (0, pad)))
    num_q = L_pad // q_tile

    est = _vmem_estimate(L_pad, D, q_tile)
    gen_max = (48 << 20) if vmem_cap < (96 << 20) else (100 << 20)
    vmem_limit = max(32 << 20, min(int(1.3 * est), gen_max))

    kernel = functools.partial(_thp_kernel, eps_sq=eps_sq, q_tile=q_tile)

    out = pl.pallas_call(
        kernel,
        out_shape=jax.ShapeDtypeStruct((B, L_pad, D), output.dtype),
        grid_spec=pltpu.PrefetchScalarGridSpec(
            num_scalar_prefetch=0,
            grid=(B, num_q),
            in_specs=[
                # x: resident across the q-tile axis (block index constant in qi)
                pl.BlockSpec((pl.Squeezed(), L_pad, D), lambda b, qi: (b, 0, 0)),
                # mask: only the (q_tile, L_pad) bf16 slab streams per step
                pl.BlockSpec((pl.Squeezed(), q_tile, L_pad), lambda b, qi: (b, qi, 0)),
                # v: resident across the q-tile axis
                pl.BlockSpec((pl.Squeezed(), L_pad, D), lambda b, qi: (b, 0, 0)),
            ],
            out_specs=pl.BlockSpec((pl.Squeezed(), q_tile, D), lambda b, qi: (b, qi, 0)),
        ),
        compiler_params=pltpu.CompilerParams(
            dimension_semantics=("parallel", "parallel"),
            vmem_limit_bytes=vmem_limit,
        ),
    )(x_bf, mask_bf, v)

    if L_pad != L:
        out = out[:, :L, :]
    return out


def thp_layer_ref(output, slf_attn_mask, weight, bias):
    """Pure-JAX f32 reference for verification (matches the PyTorch forward)."""
    D = output.shape[-1]
    temperature = float(D) ** 0.5
    attn = jnp.matmul(output / temperature, jnp.swapaxes(output, 1, 2)) * slf_attn_mask
    norm = jnp.sqrt(jnp.sum(attn * attn, axis=-1, keepdims=True))
    attn = attn / jnp.maximum(norm, 1e-5)
    lin = jnp.einsum("bld,ed->ble", output, weight) + bias
    v = jnp.where(lin > 0, lin, jnp.expm1(lin))
    return jnp.matmul(attn, v)


def _make_inputs(key, B, L, D):
    k_x, k_m, k_w, k_b = jax.random.split(key, 4)
    x = jax.random.normal(k_x, (B, L, D), dtype=jnp.float32)
    # 0/1 self-attention mask (e.g. padding mask).
    mask = (jax.random.uniform(k_m, (B, L, L)) > 0.3).astype(jnp.float32)
    # nn.Linear(D, D): xavier_uniform weight, uniform(-1/sqrt(D), 1/sqrt(D)) bias.
    xav = float(np.sqrt(6.0 / (D + D)))
    w = jax.random.uniform(k_w, (D, D), minval=-xav, maxval=xav, dtype=jnp.float32)
    bb = 1.0 / float(np.sqrt(D))
    b = jax.random.uniform(k_b, (D,), minval=-bb, maxval=bb, dtype=jnp.float32)
    return x, mask, w, b


if __name__ == "__main__":
    # Case 1: tiny shape (single query tile per batch element).
    x, mask, w, b = _make_inputs(jax.random.PRNGKey(0), 2, 8, 32)
    out = jax.block_until_ready(thp_layer(x, mask, w, b))
    ref = jax.block_until_ready(thp_layer_ref(x, mask, w, b))
    np.testing.assert_allclose(np.asarray(out), np.asarray(ref), rtol=2e-2, atol=2e-2)

    # Case 2: exercises the query-row tiling path (grid = (2, 2), 128-row tiles).
    x, mask, w, b = _make_inputs(jax.random.PRNGKey(1), 2, 256, 32)
    out = jax.block_until_ready(thp_layer(x, mask, w, b, q_tile=128))
    ref = jax.block_until_ready(thp_layer_ref(x, mask, w, b))
    np.testing.assert_allclose(np.asarray(out), np.asarray(ref), rtol=2e-2, atol=2e-2)

    # Case 3: non-divisible L exercises the row-padding path (L=200 padded to 256).
    x, mask, w, b = _make_inputs(jax.random.PRNGKey(2), 2, 200, 32)
    out = jax.block_until_ready(thp_layer(x, mask, w, b, q_tile=64))
    ref = jax.block_until_ready(thp_layer_ref(x, mask, w, b))
    np.testing.assert_allclose(np.asarray(out), np.asarray(ref), rtol=2e-2, atol=2e-2)

    print("KERNEL_OK")
</pallas_src>

<mosaic_0001>
module attributes {stable_mosaic.version = 11 : i64} {
  func.func @_thp_kernel(%arg0: i32, %arg1: i32, %arg2: memref<1x8x32xbf16, #tpu.memory_space<vmem>>, %arg3: memref<1x8x8xbf16, #tpu.memory_space<vmem>>, %arg4: memref<1x8x32xbf16, #tpu.memory_space<vmem>>, %arg5: memref<1x8x32xf32, #tpu.memory_space<vmem>>) attributes {dimension_semantics = [#tpu.dimension_semantics<parallel>, #tpu.dimension_semantics<parallel>], iteration_bounds = array<i64: 2, 1>, scalar_prefetch = 0 : i64, scratch_operands = 0 : i64, tpu.core_type = #tpu.core_type<tc>, window_params = [{transform_indices = @transform_0, window_bounds = array<i64: 1, 8, 32>}, {transform_indices = @transform_1, window_bounds = array<i64: 1, 8, 8>}, {transform_indices = @transform_2, window_bounds = array<i64: 1, 8, 32>}, {transform_indices = @transform_3, window_bounds = array<i64: 1, 8, 32>}]} {
    %c0 = arith.constant 0 : index
    %c0_0 = arith.constant 0 : index
    %c0_1 = arith.constant 0 : index
    %0 = vector.load %arg2[%c0, %c0_0, %c0_1] : memref<1x8x32xbf16, #tpu.memory_space<vmem>>, vector<1x8x32xbf16>
    %1 = vector.shape_cast %0 : vector<1x8x32xbf16> to vector<8x32xbf16>
    %c0_2 = arith.constant 0 : index
    %c0_3 = arith.constant 0 : index
    %c0_4 = arith.constant 0 : index
    %2 = vector.load %arg2[%c0_2, %c0_3, %c0_4] : memref<1x8x32xbf16, #tpu.memory_space<vmem>>, vector<1x8x32xbf16>
    %3 = vector.shape_cast %2 : vector<1x8x32xbf16> to vector<8x32xbf16>
    %cst = arith.constant dense<0.000000e+00> : vector<8x8xf32>
    %4 = tpu.matmul %1, %3, %cst {dimension_numbers = #tpu.dot_dimension_numbers<[1], [1], [0], [0], [0, 0, 1, 0], [], []>} : vector<8x32xbf16>, vector<8x32xbf16>, vector<8x8xf32> -> vector<8x8xf32>
    %c0_5 = arith.constant 0 : index
    %c0_6 = arith.constant 0 : index
    %c0_7 = arith.constant 0 : index
    %5 = vector.load %arg3[%c0_5, %c0_6, %c0_7] : memref<1x8x8xbf16, #tpu.memory_space<vmem>>, vector<1x8x8xbf16>
    %6 = vector.shape_cast %5 : vector<1x8x8xbf16> to vector<8x8xbf16>
    %7 = arith.extf %6 : vector<8x8xbf16> to vector<8x8xf32>
    %8 = arith.mulf %4, %7 : vector<8x8xf32>
    %9 = arith.mulf %8, %8 : vector<8x8xf32>
    %cst_8 = arith.constant dense<0.000000e+00> : vector<8xf32>
    %10 = vector.multi_reduction <add>, %9, %cst_8 [1] : vector<8x8xf32> to vector<8xf32>
    %11 = vector.shape_cast %10 : vector<8xf32> to vector<8x1xf32>
    %cst_9 = arith.constant 3.200000e-09 : f32
    %12 = vector.broadcast %cst_9 : f32 to vector<8x1xf32>
    %13 = arith.maximumf %11, %12 : vector<8x1xf32>
    %14 = math.rsqrt %13 : vector<8x1xf32>
    %15 = vector.broadcast %14 : vector<8x1xf32> to vector<8x8xf32>
    %16 = arith.mulf %8, %15 : vector<8x8xf32>
    %17 = arith.truncf %16 : vector<8x8xf32> to vector<8x8xbf16>
    %c0_10 = arith.constant 0 : index
    %c0_11 = arith.constant 0 : index
    %c0_12 = arith.constant 0 : index
    %18 = vector.load %arg4[%c0_10, %c0_11, %c0_12] : memref<1x8x32xbf16, #tpu.memory_space<vmem>>, vector<1x8x32xbf16>
    %19 = vector.shape_cast %18 : vector<1x8x32xbf16> to vector<8x32xbf16>
    %cst_13 = arith.constant dense<0.000000e+00> : vector<8x32xf32>
    %20 = tpu.matmul %17, %19, %cst_13 {dimension_numbers = #tpu.dot_dimension_numbers<[1], [0], [0], [1], [0, 0, 1, 1], [], []>} : vector<8x8xbf16>, vector<8x32xbf16>, vector<8x32xf32> -> vector<8x32xf32>
    %c0_14 = arith.constant 0 : index
    %c0_15 = arith.constant 0 : index
    %c0_16 = arith.constant 0 : index
    %21 = vector.load %arg5[%c0_14, %c0_15, %c0_16] : memref<1x8x32xf32, #tpu.memory_space<vmem>>, vector<1x8x32xf32>
    %22 = vector.shape_cast %21 : vector<1x8x32xf32> to vector<8x32xf32>
    %23 = vector.shape_cast %20 : vector<8x32xf32> to vector<1x8x32xf32>
    tpu.vector_store %arg5[%c0_14, %c0_15, %c0_16], %23 {strides = array<i32>} : memref<1x8x32xf32, #tpu.memory_space<vmem>>, vector<1x8x32xf32>,
    return
  }
  func.func @transform_0(%arg0: i32, %arg1: i32) -> (i32, i32, i32) {
    %c0_i32 = arith.constant 0 : i32
    %c0_i32_0 = arith.constant 0 : i32
    %c0_i32_1 = arith.constant 0 : i32
    return %arg0, %c0_i32, %c0_i32_0 : i32, i32, i32
  }
  func.func @transform_1(%arg0: i32, %arg1: i32) -> (i32, i32, i32) {
    %c0_i32 = arith.constant 0 : i32
    %c0_i32_0 = arith.constant 0 : i32
    return %arg0, %arg1, %c0_i32 : i32, i32, i32
  }
  func.func @transform_2(%arg0: i32, %arg1: i32) -> (i32, i32, i32) {
    %c0_i32 = arith.constant 0 : i32
    %c0_i32_0 = arith.constant 0 : i32
    %c0_i32_1 = arith.constant 0 : i32
    return %arg0, %c0_i32, %c0_i32_0 : i32, i32, i32
  }
  func.func @transform_3(%arg0: i32, %arg1: i32) -> (i32, i32, i32) {
    %c0_i32 = arith.constant 0 : i32
    %c0_i32_0 = arith.constant 0 : i32
    return %arg0, %arg1, %c0_i32 : i32, i32, i32
  }
}

</mosaic_0001>

<llo_original>
// kernel: tpu_custom_call.1
$region0: #{tpu_custom_call.1}
  #allocation0 [shape = 'u32[]', space=smem, size = 0x4, offset = 0x4, fixed_abs, tag = 'smem constant byte address 0x4 - core index']
  #allocation1 [shape = 'u32[144,128]{1,0:T(1,128)}', space=vmem, size = 0x12000, scoped, tag = 'internal scratch']
  %s0 = inlined_call_operand.hbm [shape: bf16[2,8,32], index: 0, kind: input, shape index: {}]
  %s1 = inlined_call_operand.hbm [shape: bf16[2,8,8], index: 1, kind: input, shape index: {}]
  %s2 = inlined_call_operand.hbm [shape: bf16[2,8,32], index: 2, kind: input, shape index: {}]
  %s3 = inlined_call_operand.hbm [shape: f32[2,8,32], index: 3, kind: output, shape index: {}]
  %s4 = sld [smem:[#allocation0]]
  $region57: #{tpu_custom_call.1} parent=0
    _
  %s6 = ssub.s32 1, %s4
  %s7 = scalar_select 0, %s6, %s4
  $region1: #{tpu_custom_call.1} parent=0
    #allocation2 [shape = 'u8[4096]{0}', space=vmem, size = 0x1000, scoped, tag = 'input window, operand 0']
    #allocation3 [shape = 's32[2]{0}', space=sflag, size = 0x8, scoped, tag = 'scoped memory for tpu_custom_call.1']
    #allocation4 [shape = 's32[2]{0}', space=sflag, size = 0x8, scoped, tag = 'scoped memory for tpu_custom_call.1']
    #allocation5 [shape = 'u8[4096]{0}', space=vmem, size = 0x1000, scoped, tag = 'input window, operand 1']
    #allocation6 [shape = 's32[2]{0}', space=sflag, size = 0x8, scoped, tag = 'scoped memory for tpu_custom_call.1']
    #allocation7 [shape = 'u8[4096]{0}', space=vmem, size = 0x1000, scoped, tag = 'input window, operand 2']
    #allocation8 [shape = 'u8[8192]{0}', space=vmem, size = 0x2000, scoped, tag = 'output window, operand 0']
    %8 = vsyncpa [#allocation3], 0
    %s9 = scalar_lea.sflag [#allocation3], 1
    %10 = vsyncpa %s9, 0
    %11 = vsyncpa [#allocation6], 0
    %s12 = scalar_lea.sflag [#allocation6], 1
    %13 = vsyncpa %s12, 0
    %14 = vsyncpa [#allocation4], 0
    %s15 = scalar_lea.sflag [#allocation4], 1
    %16 = vsyncpa %s15, 0
    loop: start=0, step=1, limit=4
    $region2: #{tpu_custom_call.1} parent=1 // loop_pre_header
      _
    $region3: #{tpu_custom_call.1} parent=1 // loop_header
      %s18 = sphi 0, %s22
      %p19 = scmp.ge.s32.totalorder %s18, 4
      %s25 = sphi 0, %s37
      %s26 = sphi 0, %s33
      %s27 = sphi 0, %s25
      %s28 = sphi 0, %s26
      %s29 = sphi 0, %s27
      %s30 = sphi 0, %s28
      %s40 = sphi 0, %s42
      %s43 = sphi 0, %s40
      %s44 = sphi 0, %s43
      %s60 = sphi 0, %s44
      %s68 = sphi 0, %s70
      %s71 = sphi 0, %s68
      %s72 = sphi 0, %s71
      %s88 = sphi 0, %s72
      %s94 = sphi 0, %s96
      %s97 = sphi 0, %s94
      %s98 = sphi 0, %s97
      %s114 = sphi 0, %s98
      %s122 = sphi 0, %s124
      %s125 = sphi 0, %s122
      %s126 = sphi 0, %s125
      %s142 = sphi 0, %s126
    $region4: #{tpu_custom_call.1} parent=1 // loop_header_branch
      %21 = sbr.rel (%p19) target = $region8
    $region5: #{tpu_custom_call.1} parent=1 // loop_body
      %s23 = ssub.s32 %s18, 1
      %s24 = ssub.s32 %s18, 2
      %s31 = sadd.s32 1, %s26
      %p32 = scmp.ge.s32.totalorder %s31, 1
      %s33 = scalar_select %p32, 0, %s31
      %s34 = sadd.s32 1, %s25
      %s35 = scalar_select %p32, %s34, %s25
      %p36 = scmp.ge.s32.totalorder %s35, 2
      %s37 = scalar_select %p36, 0, %s35
      %s38 = ssub.s32 %s25, %s37
      %p39 = scmp.eq.s32.totalorder %s38, 0
      %s41 = sadd.s32 %s40, 1
      %s42 = scalar_select %p39, %s40, %s41
      %p45 = pneg %p39
      %p46 = scmp.eq.s32.totalorder %s18, 1
      %p47 = por %p45, %p46
      %p48 = scmp.ne.s32.totalorder %s40, %s43
      %p49 = scmp.eq.s32.totalorder %s18, 0
      %p50 = por %p48, %p49
      %p51 = scmp.ne.s32.totalorder %s40, %s43
      %p52 = scmp.eq.s32.totalorder %s23, 1
      %p53 = por %p51, %p52
      %p54 = scmp.ne.s32.totalorder %s43, %s44
      %p55 = scmp.eq.s32.totalorder %s23, 0
      %p56 = por %p54, %p55
      %p57 = scmp.ne.s32.totalorder %s43, %s44
      %p58 = scmp.eq.s32.totalorder %s24, 1
      %p59 = por %p57, %p58
      %p61 = scmp.ne.s32.totalorder %s44, %s60
      %p62 = scmp.eq.s32.totalorder %s24, 0
      %p63 = por %p61, %p62
      %s64 = ssub.s32 %s25, %s37
      %s65 = ssub.s32 %s26, %s33
      %s66 = sor.u32 %s64, %s65
      %p67 = scmp.eq.s32.totalorder %s66, 0
      %s69 = sadd.s32 %s68, 1
      %s70 = scalar_select %p67, %s68, %s69
      %p73 = pneg %p67
      %p74 = scmp.eq.s32.totalorder %s18, 1
      %p75 = por %p73, %p74
      %p76 = scmp.ne.s32.totalorder %s68, %s71
      %p77 = scmp.eq.s32.totalorder %s18, 0
      %p78 = por %p76, %p77
      %p79 = scmp.ne.s32.totalorder %s68, %s71
      %p80 = scmp.eq.s32.totalorder %s23, 1
      %p81 = por %p79, %p80
      %p82 = scmp.ne.s32.totalorder %s71, %s72
      %p83 = scmp.eq.s32.totalorder %s23, 0
      %p84 = por %p82, %p83
      %p85 = scmp.ne.s32.totalorder %s71, %s72
      %p86 = scmp.eq.s32.totalorder %s24, 1
      %p87 = por %p85, %p86
      %p89 = scmp.ne.s32.totalorder %s72, %s88
      %p90 = scmp.eq.s32.totalorder %s24, 0
      %p91 = por %p89, %p90
      %s92 = ssub.s32 %s25, %s37
      %p93 = scmp.eq.s32.totalorder %s92, 0
      %s95 = sadd.s32 %s94, 1
      %s96 = scalar_select %p93, %s94, %s95
      %p99 = pneg %p93
      %p100 = scmp.eq.s32.totalorder %s18, 1
      %p101 = por %p99, %p100
      %p102 = scmp.ne.s32.totalorder %s94, %s97
      %p103 = scmp.eq.s32.totalorder %s18, 0
      %p104 = por %p102, %p103
      %p105 = scmp.ne.s32.totalorder %s94, %s97
      %p106 = scmp.eq.s32.totalorder %s23, 1
      %p107 = por %p105, %p106
      %p108 = scmp.ne.s32.totalorder %s97, %s98
      %p109 = scmp.eq.s32.totalorder %s23, 0
      %p110 = por %p108, %p109
      %p111 = scmp.ne.s32.totalorder %s97, %s98
      %p112 = scmp.eq.s32.totalorder %s24, 1
      %p113 = por %p111, %p112
      %p115 = scmp.ne.s32.totalorder %s98, %s114
      %p116 = scmp.eq.s32.totalorder %s24, 0
      %p117 = por %p115, %p116
      %s118 = ssub.s32 %s25, %s37
      %s119 = ssub.s32 %s26, %s33
      %s120 = sor.u32 %s118, %s119
      %p121 = scmp.eq.s32.totalorder %s120, 0
      %s123 = sadd.s32 %s122, 1
      %s124 = scalar_select %p121, %s122, %s123
      %p127 = pneg %p121
      %p128 = scmp.eq.s32.totalorder %s18, 1
      %p129 = por %p127, %p128
      %p130 = scmp.ne.s32.totalorder %s122, %s125
      %p131 = scmp.eq.s32.totalorder %s18, 0
      %p132 = por %p130, %p131
      %p133 = scmp.ne.s32.totalorder %s122, %s125
      %p134 = scmp.eq.s32.totalorder %s23, 1
      %p135 = por %p133, %p134
      %p136 = scmp.ne.s32.totalorder %s125, %s126
      %p137 = scmp.eq.s32.totalorder %s23, 0
      %p138 = por %p136, %p137
      %p139 = scmp.ne.s32.totalorder %s125, %s126
      %p140 = scmp.eq.s32.totalorder %s24, 1
      %p141 = por %p139, %p140
      %p143 = scmp.ne.s32.totalorder %s126, %s142
      %p144 = scmp.eq.s32.totalorder %s24, 0
      %p145 = por %p143, %p144
      %p146 = scmp.le.s32.totalorder 1, %s18
      %p147 = scmp.lt.s32.totalorder %s18, 3
      %p148 = pnand %p146, %p147
      %p149 = pneg %p148
      // Predicated region
      $region9: #{tpu_custom_call.1} parent=5 // pred_check
        _
      $region10: #{tpu_custom_call.1} parent=5 // pred_check_branch
        %151 = sbr.rel (%p148) target = $region12
      $region11: #{tpu_custom_call.1} parent=5 // pred_region
        %s152 = ssub.s32 %s18, 1
      $region12: #{tpu_custom_call.1} parent=5 // pred_fallthru
        _
      %p153 = scmp.lt.s32.totalorder %s18, 2
      // Predicated region
      $region13: #{tpu_custom_call.1} parent=5 // pred_check
        %p154 = pneg %p153
      $region14: #{tpu_custom_call.1} parent=5 // pred_check_branch
        %156 = sbr.rel (%p154) target = $region16
      $region15: #{tpu_custom_call.1} parent=5 // pred_region
        // Predicated region
        $region17: #{tpu_custom_call.1} parent=15 // pred_check
          %p157 = pneg %p50
        $region18: #{tpu_custom_call.1} parent=15 // pred_check_branch
          %159 = sbr.rel (%p157) target = $region20
        $region19: #{tpu_custom_call.1} parent=15 // pred_region
          %s160 = sand.u32 %s40, 1
          %s161 = scalar_lea.sflag [#allocation3], %s160
          %s162 = sand.u32 %s40, 1
          %s163 = smul.addr %s162, 4
          %s164 = scalar_lea.vmem [#allocation2], %s163
          %s166 = ssub.s32 64, 64
          %167 = vsyncadd %s161, %s166
          %s168 = smul.addr %s25, 64
          %s169 = scalar_lea.hbm %s0, %s168
          %s171 = sshll.u32 %s164, 4
          %s172 = int_to_ptr.vmem [resolvable:$true] %s171
          %174 = dma.hbm_to_vmem [thread:$0]  %s169, 64, %s172, %s161
        $region20: #{tpu_custom_call.1} parent=15 // pred_fallthru
          _
        // Predicated region
        $region21: #{tpu_custom_call.1} parent=15 // pred_check
          %p175 = pneg %p78
        $region22: #{tpu_custom_call.1} parent=15 // pred_check_branch
          %177 = sbr.rel (%p175) target = $region24
        $region23: #{tpu_custom_call.1} parent=15 // pred_region
          %s178 = sand.u32 %s18, 1
          %s179 = scalar_lea.sflag [#allocation6], %s178
          %s180 = sand.u32 %s68, 1
          %s181 = smul.addr %s180, 4
          %s182 = scalar_lea.vmem [#allocation5], %s181
          %s184 = ssub.s32 64, 64
          %185 = vsyncadd %s179, %s184
          %s186 = sadd.s32 %s26, %s25
          %s187 = smul.addr %s186, 64
          %s188 = scalar_lea.hbm %s1, %s187
          %s190 = sshll.u32 %s182, 4
          %s191 = int_to_ptr.vmem [resolvable:$true] %s190
          %193 = dma.hbm_to_vmem [thread:$0]  %s188, 64, %s191, %s179
        $region24: #{tpu_custom_call.1} parent=15 // pred_fallthru
          _
        // Predicated region
        $region25: #{tpu_custom_call.1} parent=15 // pred_check
          %p194 = pneg %p104
        $region26: #{tpu_custom_call.1} parent=15 // pred_check_branch
          %196 = sbr.rel (%p194) target = $region28
        $region27: #{tpu_custom_call.1} parent=15 // pred_region
          %s197 = sand.u32 %s18, 1
          %s198 = scalar_lea.sflag [#allocation6], %s197
          %s199 = sand.u32 %s94, 1
          %s200 = smul.addr %s199, 4
          %s201 = scalar_lea.vmem [#allocation7], %s200
          %s203 = ssub.s32 64, 64
          %204 = vsyncadd %s198, %s203
          %s205 = smul.addr %s25, 64
          %s206 = scalar_lea.hbm %s2, %s205
          %s208 = sshll.u32 %s201, 4
          %s209 = int_to_ptr.vmem [resolvable:$true] %s208
          %211 = dma.hbm_to_vmem [thread:$0]  %s206, 64, %s209, %s198
        $region28: #{tpu_custom_call.1} parent=15 // pred_fallthru
          _
      $region16: #{tpu_custom_call.1} parent=5 // pred_fallthru
        _
      %p212 = scmp.le.s32.totalorder 1, %s18
      %p213 = scmp.lt.s32.totalorder %s18, 3
      %p214 = pnand %p212, %p213
      %p215 = pneg %p214
      // Predicated region
      $region29: #{tpu_custom_call.1} parent=5 // pred_check
        _
      $region30: #{tpu_custom_call.1} parent=5 // pred_check_branch
        %217 = sbr.rel (%p214) target = $region32
      $region31: #{tpu_custom_call.1} parent=5 // pred_region
        %s218 = ssub.s32 %s18, 1
        %s219 = sand.u32 %s43, 1
        %s220 = scalar_lea.sflag [#allocation3], %s219
        %s221 = sand.u32 %s43, 1
        %s222 = smul.addr %s221, 4
        %s223 = scalar_lea.vmem [#allocation2], %s222
        // Predicated region
        $region33: #{tpu_custom_call.1} parent=31 // pred_check
          %p224 = pneg %p56
        $region34: #{tpu_custom_call.1} parent=31 // pred_check_branch
          %226 = sbr.rel (%p224) target = $region36
        $region35: #{tpu_custom_call.1} parent=31 // pred_region
          %227 = dma.done %s220, 64
        $region36: #{tpu_custom_call.1} parent=31 // pred_fallthru
          _
        %s228 = sand.u32 %s23, 1
        %s229 = scalar_lea.sflag [#allocation6], %s228
        %s230 = sand.u32 %s71, 1
        %s231 = smul.addr %s230, 4
        %s232 = scalar_lea.vmem [#allocation5], %s231
        // Predicated region
        $region37: #{tpu_custom_call.1} parent=31 // pred_check
          %p233 = pneg %p84
        $region38: #{tpu_custom_call.1} parent=31 // pred_check_branch
          %235 = sbr.rel (%p233) target = $region40
        $region39: #{tpu_custom_call.1} parent=31 // pred_region
          %236 = dma.done %s229, 64
        $region40: #{tpu_custom_call.1} parent=31 // pred_fallthru
          _
        %s237 = sand.u32 %s23, 1
        %s238 = scalar_lea.sflag [#allocation6], %s237
        %s239 = sand.u32 %s97, 1
        %s240 = smul.addr %s239, 4
        %s241 = scalar_lea.vmem [#allocation7], %s240
        // Predicated region
        $region41: #{tpu_custom_call.1} parent=31 // pred_check
          %p242 = pneg %p110
        $region42: #{tpu_custom_call.1} parent=31 // pred_check_branch
          %244 = sbr.rel (%p242) target = $region44
        $region43: #{tpu_custom_call.1} parent=31 // pred_region
          %245 = dma.done %s238, 64
        $region44: #{tpu_custom_call.1} parent=31 // pred_fallthru
          _
        %s246 = sand.u32 %s43, 1
        %s247 = scalar_lea.sflag [#allocation3], %s246
        %s248 = sand.u32 %s43, 1
        %s249 = smul.addr %s248, 4
        %s250 = scalar_lea.vmem [#allocation2], %s249
        %p251 = pneg %p56
        %p252 = pneg %p53
        %s253 = sand.u32 %s23, 1
        %s254 = scalar_lea.sflag [#allocation6], %s253
        %s255 = sand.u32 %s71, 1
        %s256 = smul.addr %s255, 4
        %s257 = scalar_lea.vmem [#allocation5], %s256
        %p258 = pneg %p84
        %p259 = pneg %p81
        %s260 = sand.u32 %s23, 1
        %s261 = scalar_lea.sflag [#allocation6], %s260
        %s262 = sand.u32 %s97, 1
        %s263 = smul.addr %s262, 4
        %s264 = scalar_lea.vmem [#allocation7], %s263
        %p265 = pneg %p110
        %p266 = pneg %p107
        %p267 = pneg %p138
        %p268 = pneg %p135
        %s269 = sand.u32 %s125, 1
        %s270 = scalar_lea.sflag [#allocation4], %s269
        %s271 = sand.u32 %s125, 1
        %s272 = smul.addr %s271, 8
        %s273 = scalar_lea.vmem [#allocation8], %s272
        %v275 = vld [vmem:[%s223] sm:$0xf]
        %vm276 = vcmask 261120
        %v278 = vsel %vm276, %v275, 0
        %280 = vmatprep.subr.bf16.mxu0 0
        %281 = vmatpush1.bf16.xpose.msra.mxu0 %v278
        %282 = vmatprep.subr.bf16.mxu0 0
        %283 = vmatpush1.bf16.xpose.msra.mxu0 0
        %284 = vmatprep.subr.bf16.mxu0 0
        %285 = vmatpush1.bf16.xpose.msra.mxu0 0
        %286 = vmatprep.subr.bf16.mxu0 0
        %287 = vmatpush1.bf16.xpose.msra.mxu0 0
        %288 = vmatprep.subr.bf16.mxu0 0
        %289 = vmatpush1.bf16.xpose.msra.mxu0 0
        %290 = vmatprep.subr.bf16.mxu0 0
        %291 = vmatpush1.bf16.xpose.msra.mxu0 0
        %292 = vmatprep.subr.bf16.mxu0 0
        %293 = vmatpush1.bf16.xpose.msra.mxu0 0
        %294 = vmatprep.subr.bf16.mxu0 0
        %295 = vmatpush1.bf16.xpose.msra.mxu0 0
        %296 = vmatprep.subr.bf16.mxu0 0
        %297 = vmatpush1.bf16.xpose.msra.mxu0 0
        %298 = vmatprep.subr.bf16.mxu0 0
        %299 = vmatpush1.bf16.xpose.msra.mxu0 0
        %300 = vmatprep.subr.bf16.mxu0 0
        %301 = vmatpush1.bf16.xpose.msra.mxu0 0
        %302 = vmatprep.subr.bf16.mxu0 0
        %303 = vmatpush1.bf16.xpose.msra.mxu0 0
        %304 = vmatprep.subr.bf16.mxu0 0
        %305 = vmatpush1.bf16.xpose.msra.mxu0 0
        %306 = vmatprep.subr.bf16.mxu0 0
        %307 = vmatpush1.bf16.xpose.msra.mxu0 0
        %308 = vmatprep.subr.bf16.mxu0 0
        %309 = vmatpush1.bf16.xpose.msra.mxu0 0
        %310 = vmatprep.subr.bf16.mxu0 0
        %311 = vmatpush1.bf16.xpose.msra.mxu0 0
        %312 = vmatprep.mubr.bf16.mxu0 0
        %313 = vmatmul.mubr.bf16.gmra.mrb[0].mxu0 %v278
        %v314 = vpop.f32.mrb[0].mxu0
        %v315 = vadd.f32 0.0, %v314
        %v316 = vpop.f32.mrb[0].mxu0
        %v317 = vpop.f32.mrb[0].mxu0
        %v318 = vpop.f32.mrb[0].mxu0
        %319 = vdwg.mxu0
        %v320 = vld [vmem:[%s232] sm:$0xf]
        %v321 = vunpack.c.l.bf16 %v320
        %v322 = vmul.f32 %v315, %v321
        %v323 = vmul.f32 %v322, %v322
        %vm324 = vcmask 64512
        %v325 = vsel %vm324, %v323, 0.0
        %326 = vadd.xlane.f32.xlu0 %v325
        %v327 = vpop.xlane.xlu0 %326
        %v328 = vmax.f32 %v327, 3.2e-09
        %v329 = vrsqrt.pop %v328
        %v330 = vmul.f32 %v322, %v329
        %v331 = vpack.c.bf16 %v330, %v330
        %v332 = vld [vmem:[%s241] sm:$0xf]
        %v334 = vsel %vm324, %v331, 0
        %vm336 = vcmask 1043456
        %v338 = vsel %vm336, %v332, 0
        %340 = vmatprep.subr.bf16.mxu0 0
        %341 = vmatpush1.bf16.msra.mxu0 %v338
        %342 = vmatprep.subr.bf16.mxu0 0
        %343 = vmatpush1.bf16.msra.mxu0 0
        %344 = vmatprep.subr.bf16.mxu0 0
        %345 = vmatpush1.bf16.msra.mxu0 0
        %346 = vmatprep.subr.bf16.mxu0 0
        %347 = vmatpush1.bf16.msra.mxu0 0
        %348 = vmatprep.subr.bf16.mxu0 0
        %349 = vmatpush1.bf16.msra.mxu0 0
        %350 = vmatprep.subr.bf16.mxu0 0
        %351 = vmatpush1.bf16.msra.mxu0 0
        %352 = vmatprep.subr.bf16.mxu0 0
        %353 = vmatpush1.bf16.msra.mxu0 0
        %354 = vmatprep.subr.bf16.mxu0 0
        %355 = vmatpush1.bf16.msra.mxu0 0
        %356 = vmatprep.subr.bf16.mxu0 0
        %357 = vmatpush1.bf16.msra.mxu0 0
        %358 = vmatprep.subr.bf16.mxu0 0
        %359 = vmatpush1.bf16.msra.mxu0 0
        %360 = vmatprep.subr.bf16.mxu0 0
        %361 = vmatpush1.bf16.msra.mxu0 0
        %362 = vmatprep.subr.bf16.mxu0 0
        %363 = vmatpush1.bf16.msra.mxu0 0
        %364 = vmatprep.subr.bf16.mxu0 0
        %365 = vmatpush1.bf16.msra.mxu0 0
        %366 = vmatprep.subr.bf16.mxu0 0
        %367 = vmatpush1.bf16.msra.mxu0 0
        %368 = vmatprep.subr.bf16.mxu0 0
        %369 = vmatpush1.bf16.msra.mxu0 0
        %370 = vmatprep.subr.bf16.mxu0 0
        %371 = vmatpush1.bf16.msra.mxu0 0
        %372 = vmatprep.mubr.bf16.mxu0 0
        %373 = vmatmul.mubr.bf16.gmra.mrb[0].mxu0 %v334
        %v374 = vpop.f32.mrb[0].mxu0
        %v375 = vadd.f32 0.0, %v374
        %v376 = vpop.f32.mrb[0].mxu0
        %v377 = vpop.f32.mrb[0].mxu0
        %v378 = vpop.f32.mrb[0].mxu0
        %379 = vdwg.mxu0
        %380 = vst.msk [vmem:[%s273] sm:$0xff] %vm276, %v375
        %s381 = sand.u32 %s125, 1
        %s382 = scalar_lea.sflag [#allocation4], %s381
        %s383 = sand.u32 %s125, 1
        %s384 = smul.addr %s383, 8
        %s385 = scalar_lea.vmem [#allocation8], %s384
        // Predicated region
        $region45: #{tpu_custom_call.1} parent=31 // pred_check
          %p386 = pneg %p135
        $region46: #{tpu_custom_call.1} parent=31 // pred_check_branch
          %388 = sbr.rel (%p386) target = $region48
        $region47: #{tpu_custom_call.1} parent=31 // pred_region
          %s390 = ssub.s32 128, 128
          %391 = vsyncadd %s382, %s390
          %s392 = sadd.s32 %s28, %s27
          %s393 = smul.addr %s392, 128
          %s394 = scalar_lea.hbm %s3, %s393
          %s396 = sshll.u32 %s385, 4
          %s397 = int_to_ptr.vmem [resolvable:$true] %s396
          %399 = dma.vmem_to_hbm [thread:$0]  %s397, 128, %s394, %s382
        $region48: #{tpu_custom_call.1} parent=31 // pred_fallthru
          _
      $region32: #{tpu_custom_call.1} parent=5 // pred_fallthru
        _
      %p400 = scmp.le.s32.totalorder 2, %s18
      // Predicated region
      $region49: #{tpu_custom_call.1} parent=5 // pred_check
        %p401 = pneg %p400
      $region50: #{tpu_custom_call.1} parent=5 // pred_check_branch
        %403 = sbr.rel (%p401) target = $region52
      $region51: #{tpu_custom_call.1} parent=5 // pred_region
        %s404 = ssub.s32 %s18, 2
        // Predicated region
        $region53: #{tpu_custom_call.1} parent=51 // pred_check
          %p405 = pneg %p141
        $region54: #{tpu_custom_call.1} parent=51 // pred_check_branch
          %407 = sbr.rel (%p405) target = $region56
        $region55: #{tpu_custom_call.1} parent=51 // pred_region
          %s408 = sand.u32 %s126, 1
          %s409 = scalar_lea.sflag [#allocation4], %s408
          %s410 = sand.u32 %s126, 1
          %s411 = smul.addr %s410, 8
          %s412 = scalar_lea.vmem [#allocation8], %s411
          %413 = dma.done %s409, 128
        $region56: #{tpu_custom_call.1} parent=51 // pred_fallthru
          _
      $region52: #{tpu_custom_call.1} parent=5 // pred_fallthru
        _
    $region6: #{tpu_custom_call.1} parent=1 // loop_footer
      %s22 = sadd.s32 1, %s18
    $region7: #{tpu_custom_call.1} parent=1 // loop_footer_branch
      %17 = sbr.rel target = $region3
    $region8: #{tpu_custom_call.1} parent=1 // loop_exit
      _
    %414 = vsyncpa [#allocation3], 1
    %s415 = scalar_lea.sflag [#allocation3], 1
    %416 = vsyncpa %s415, 1
    %417 = vsyncpa [#allocation6], 1
    %s418 = scalar_lea.sflag [#allocation6], 1
    %419 = vsyncpa %s418, 1
    %420 = vsyncpa [#allocation4], 1
    %s421 = scalar_lea.sflag [#allocation4], 1
    %422 = vsyncpa %s421, 1

</llo_original>
